<compile_context>
chip_gen: v7x
topology: tpu7x:2x2x1
jax: 0.10.0
libtpu: 0.0.40
codegen_flags: <defaults>
</compile_context>

<pallas_src>
import functools

import jax
import jax.numpy as jnp
from jax.experimental import pallas as pl
from jax.experimental.pallas import tpu as pltpu

_LANES = 128
_INV_2_24 = 1.0 / (1 << 24)


def _mix32(x):
    """murmur/xxhash-style 32-bit finalizer on uint32 arrays (pure VPU ops)."""
    x = x ^ (x >> 16)
    x = x * jnp.uint32(0x7FEB352D)
    x = x ^ (x >> 15)
    x = x * jnp.uint32(0x846CA68B)
    x = x ^ (x >> 16)
    return x


def _uniform_from_counter(counter_u32, seed_u32):
    """Stateless U(0,1) from a per-element counter and a scalar seed."""
    bits = _mix32(counter_u32 ^ (seed_u32 * jnp.uint32(0x9E3779B9)))
    bits = _mix32(bits + jnp.uint32(0x85EBCA6B))
    mant = (bits >> 8).astype(jnp.int32)                # 24 bits, fits int32
    return (mant.astype(jnp.float32) + 0.5) * _INV_2_24  # strictly in (0, 1)


def _gumbel_noise(counter_u32, seed_u32):
    u = _uniform_from_counter(counter_u32, seed_u32)
    # torch: gumbels = -Exp(1).log(), with Exp(1) = -log(U)
    return -jnp.log(-jnp.log(u))


def _gumbel_sigmoid_kernel(seed_ref, x_ref, o_ref, *, inv_tau, bias, hard,
                           training, block_rows, lanes):
    x = x_ref[...].astype(jnp.float32)
    if training:
        seed_u = seed_ref[0].astype(jnp.uint32)
        row = jax.lax.broadcasted_iota(jnp.int32, (block_rows, lanes), 0)
        col = jax.lax.broadcasted_iota(jnp.int32, (block_rows, lanes), 1)
        counter = ((pl.program_id(0) * block_rows + row) * lanes + col)
        g = _gumbel_noise(counter.astype(jnp.uint32), seed_u)
        z = (x + g) * inv_tau + bias
        if hard:
            # round(sigmoid(z)) == (z > 0) (sigmoid is monotone; ties at z==0
            # round-half-to-even to 0, matching the strict '>').
            y = (z > 0.0).astype(jnp.float32)
        else:
            y = jax.nn.sigmoid(z)
    else:
        # round(sigmoid(x)) == (x > 0)
        y = (x > 0.0).astype(jnp.float32)
    o_ref[...] = y.astype(o_ref.dtype)


def gumbel_sigmoid(x, seed, *, hard=True, temp=1.0, bias=0.0, training=True,
                   max_block_rows=2048):
    """Flatten to a lane-dense (rows, 128) slab, run the Pallas kernel, reshape back."""
    orig_shape = x.shape
    orig_dtype = x.dtype
    n = x.size
    lanes = _LANES

    rows_needed = pl.cdiv(n, lanes)
    block_rows = min(max_block_rows, ((rows_needed + 7) // 8) * 8)
    grid = pl.cdiv(rows_needed, block_rows)
    rows = grid * block_rows
    padded = rows * lanes

    xf = jnp.ravel(x)
    if padded != n:
        xf = jnp.pad(xf, (0, padded - n))
    x2d = xf.reshape(rows, lanes)

    seed_arr = jnp.asarray([seed], dtype=jnp.int32)

    kernel = functools.partial(
        _gumbel_sigmoid_kernel,
        inv_tau=1.0 / float(temp), bias=float(bias),
        hard=bool(hard), training=bool(training),
        block_rows=block_rows, lanes=lanes)

    out2d = pl.pallas_call(
        kernel,
        out_shape=jax.ShapeDtypeStruct((rows, lanes), orig_dtype),
        grid_spec=pltpu.PrefetchScalarGridSpec(
            num_scalar_prefetch=1,             # seed lives in SMEM
            grid=(grid,),
            in_specs=[pl.BlockSpec((block_rows, lanes), lambda i, seed: (i, 0))],
            out_specs=pl.BlockSpec((block_rows, lanes), lambda i, seed: (i, 0)),
        ),
        compiler_params=pltpu.CompilerParams(
            dimension_semantics=("parallel",),   # stateless PRNG -> fully parallel
            vmem_limit_bytes=64 << 20,
        ),
    )(seed_arr, x2d)

    out = out2d.reshape(-1)
    if padded != n:
        out = out[:n]
    return out.reshape(orig_shape)


def _reference_gumbel_sigmoid(x, seed, *, hard, temp, bias, training):
    """Pure-JAX reference using the same stateless noise (no padding case)."""
    if not training:
        return jnp.round(jax.nn.sigmoid(x))
    n = x.size
    counter = jnp.arange(n, dtype=jnp.int32).astype(jnp.uint32)
    g = _gumbel_noise(counter, jnp.uint32(seed))
    z = (x.reshape(-1).astype(jnp.float32) + g) * (1.0 / temp) + bias
    y = jnp.where(z > 0.0, 1.0, 0.0) if hard else jax.nn.sigmoid(z)
    return y.reshape(x.shape).astype(x.dtype)


if __name__ == "__main__":
    key = jax.random.PRNGKey(0)
    # GumbelSigmoid has no parameters; only an input tensor is needed.
    x = jax.random.normal(key, (2, 4, 16, 16), dtype=jnp.float32)

    # Training path (hard gumbel-sigmoid): binary output, matches reference.
    y_train = gumbel_sigmoid(x, seed=42, hard=True, temp=1.0, bias=0.0,
                             training=True)
    jax.block_until_ready(y_train)
    assert y_train.shape == x.shape and y_train.dtype == x.dtype
    assert bool(jnp.all((y_train == 0.0) | (y_train == 1.0)))
    ref_hard = _reference_gumbel_sigmoid(x, 42, hard=True, temp=1.0, bias=0.0,
                                         training=True)
    assert bool(jnp.allclose(y_train, ref_hard))

    # Soft training path: matches the pure-JAX reference with identical noise.
    y_soft = gumbel_sigmoid(x, seed=7, hard=False, temp=0.5, bias=0.1,
                            training=True)
    jax.block_until_ready(y_soft)
    ref_soft = _reference_gumbel_sigmoid(x, 7, hard=False, temp=0.5, bias=0.1,
                                         training=True)
    assert bool(jnp.allclose(y_soft, ref_soft, rtol=1e-6, atol=1e-6))
    assert bool(jnp.all((y_soft >= 0.0) & (y_soft <= 1.0)))

    # Eval path is deterministic: round(sigmoid(x)) — check against JAX ref.
    y_eval = gumbel_sigmoid(x, seed=0, training=False)
    jax.block_until_ready(y_eval)
    ref_eval = jnp.round(jax.nn.sigmoid(x))
    assert bool(jnp.allclose(y_eval, ref_eval))

    print("KERNEL_OK")
</pallas_src>

<mosaic_0001>
module attributes {stable_mosaic.version = 11 : i64} {
  func.func @_gumbel_sigmoid_kernel(%arg0: i32, %arg1: memref<1xi32, #tpu.memory_space<smem>>, %arg2: memref<16x128xf32, #tpu.memory_space<vmem>>, %arg3: memref<16x128xf32, #tpu.memory_space<vmem>>) attributes {dimension_semantics = [#tpu.dimension_semantics<parallel>], iteration_bounds = array<i64: 1>, scalar_prefetch = 1 : i64, scratch_operands = 0 : i64, tpu.core_type = #tpu.core_type<tc>, window_params = [{transform_indices = @transform_0, window_bounds = array<i64: 16, 128>}, {transform_indices = @transform_1, window_bounds = array<i64: 16, 128>}]} {
    %c0 = arith.constant 0 : index
    %c0_0 = arith.constant 0 : index
    %0 = vector.load %arg2[%c0, %c0_0] : memref<16x128xf32, #tpu.memory_space<vmem>>, vector<16x128xf32>
    %c0_1 = arith.constant 0 : index
    %1 = memref.load %arg1[%c0_1] : memref<1xi32, #tpu.memory_space<smem>>
    %2 = tpu.iota {dimensions = array<i32: 0>} : vector<16x128xi32>
    %3 = tpu.iota {dimensions = array<i32: 1>} : vector<16x128xi32>
    %c16_i32 = arith.constant 16 : i32
    %4 = arith.muli %arg0, %c16_i32 : i32
    %5 = vector.broadcast %4 : i32 to vector<16x128xi32>
    %6 = arith.addi %5, %2 : vector<16x128xi32>
    %c128_i32 = arith.constant 128 : i32
    %7 = vector.broadcast %c128_i32 : i32 to vector<16x128xi32>
    %8 = arith.muli %6, %7 : vector<16x128xi32>
    %9 = arith.addi %8, %3 : vector<16x128xi32>
    %c-1640531527_i32 = arith.constant -1640531527 : i32
    %10 = arith.muli %1, %c-1640531527_i32 : i32
    %11 = vector.broadcast %10 : i32 to vector<16x128xi32>
    %12 = arith.xori %9, %11 : vector<16x128xi32>
    %c16_i32_2 = arith.constant 16 : i32
    %13 = vector.broadcast %c16_i32_2 : i32 to vector<16x128xi32>
    %14 = arith.shrui %12, %13 : vector<16x128xi32>
    %15 = arith.xori %12, %14 : vector<16x128xi32>
    %c2146121005_i32 = arith.constant 2146121005 : i32
    %16 = vector.broadcast %c2146121005_i32 : i32 to vector<16x128xi32>
    %17 = arith.muli %15, %16 : vector<16x128xi32>
    %c15_i32 = arith.constant 15 : i32
    %18 = vector.broadcast %c15_i32 : i32 to vector<16x128xi32>
    %19 = arith.shrui %17, %18 : vector<16x128xi32>
    %20 = arith.xori %17, %19 : vector<16x128xi32>
    %c-2073254261_i32 = arith.constant -2073254261 : i32
    %21 = vector.broadcast %c-2073254261_i32 : i32 to vector<16x128xi32>
    %22 = arith.muli %20, %21 : vector<16x128xi32>
    %c16_i32_3 = arith.constant 16 : i32
    %23 = vector.broadcast %c16_i32_3 : i32 to vector<16x128xi32>
    %24 = arith.shrui %22, %23 : vector<16x128xi32>
    %25 = arith.xori %22, %24 : vector<16x128xi32>
    %c-2048144789_i32 = arith.constant -2048144789 : i32
    %26 = vector.broadcast %c-2048144789_i32 : i32 to vector<16x128xi32>
    %27 = arith.addi %25, %26 : vector<16x128xi32>
    %c16_i32_4 = arith.constant 16 : i32
    %28 = vector.broadcast %c16_i32_4 : i32 to vector<16x128xi32>
    %29 = arith.shrui %27, %28 : vector<16x128xi32>
    %30 = arith.xori %27, %29 : vector<16x128xi32>
    %c2146121005_i32_5 = arith.constant 2146121005 : i32
    %31 = vector.broadcast %c2146121005_i32_5 : i32 to vector<16x128xi32>
    %32 = arith.muli %30, %31 : vector<16x128xi32>
    %c15_i32_6 = arith.constant 15 : i32
    %33 = vector.broadcast %c15_i32_6 : i32 to vector<16x128xi32>
    %34 = arith.shrui %32, %33 : vector<16x128xi32>
    %35 = arith.xori %32, %34 : vector<16x128xi32>
    %c-2073254261_i32_7 = arith.constant -2073254261 : i32
    %36 = vector.broadcast %c-2073254261_i32_7 : i32 to vector<16x128xi32>
    %37 = arith.muli %35, %36 : vector<16x128xi32>
    %c16_i32_8 = arith.constant 16 : i32
    %38 = vector.broadcast %c16_i32_8 : i32 to vector<16x128xi32>
    %39 = arith.shrui %37, %38 : vector<16x128xi32>
    %40 = arith.xori %37, %39 : vector<16x128xi32>
    %c8_i32 = arith.constant 8 : i32
    %41 = vector.broadcast %c8_i32 : i32 to vector<16x128xi32>
    %42 = arith.shrui %40, %41 : vector<16x128xi32>
    %43 = arith.sitofp %42 : vector<16x128xi32> to vector<16x128xf32>
    %cst = arith.constant 5.000000e-01 : f32
    %44 = vector.broadcast %cst : f32 to vector<16x128xf32>
    %45 = arith.addf %43, %44 : vector<16x128xf32>
    %cst_9 = arith.constant 5.96046448E-8 : f32
    %46 = vector.broadcast %cst_9 : f32 to vector<16x128xf32>
    %47 = arith.mulf %45, %46 : vector<16x128xf32>
    %48 = math.log %47 : vector<16x128xf32>
    %cst_10 = arith.constant 0.000000e+00 : f32
    %49 = vector.broadcast %cst_10 : f32 to vector<16x128xf32>
    %50 = arith.subf %49, %48 : vector<16x128xf32>
    %51 = math.log %50 : vector<16x128xf32>
    %cst_11 = arith.constant 0.000000e+00 : f32
    %52 = vector.broadcast %cst_11 : f32 to vector<16x128xf32>
    %53 = arith.subf %52, %51 : vector<16x128xf32>
    %54 = arith.addf %0, %53 : vector<16x128xf32>
    %cst_12 = arith.constant 1.000000e+00 : f32
    %55 = vector.broadcast %cst_12 : f32 to vector<16x128xf32>
    %56 = arith.mulf %54, %55 : vector<16x128xf32>
    %cst_13 = arith.constant 0.000000e+00 : f32
    %57 = vector.broadcast %cst_13 : f32 to vector<16x128xf32>
    %58 = arith.addf %56, %57 : vector<16x128xf32>
    %cst_14 = arith.constant 0.000000e+00 : f32
    %59 = vector.broadcast %cst_14 : f32 to vector<16x128xf32>
    %60 = arith.cmpf ogt, %58, %59 : vector<16x128xf32>
    %61 = arith.extui %60 : vector<16x128xi1> to vector<16x128xi32>
    %62 = arith.sitofp %61 : vector<16x128xi32> to vector<16x128xf32>
    %c0_15 = arith.constant 0 : index
    %c0_16 = arith.constant 0 : index
    %63 = vector.load %arg3[%c0_15, %c0_16] : memref<16x128xf32, #tpu.memory_space<vmem>>, vector<16x128xf32>
    tpu.vector_store %arg3[%c0_15, %c0_16], %62 {strides = array<i32>} : memref<16x128xf32, #tpu.memory_space<vmem>>, vector<16x128xf32>,
    return
  }
  func.func @transform_0(%arg0: i32, %arg1: memref<1xi32, #tpu.memory_space<smem>>) -> (i32, i32) {
    %c0_i32 = arith.constant 0 : i32
    %c0_i32_0 = arith.constant 0 : i32
    return %arg0, %c0_i32 : i32, i32
  }
  func.func @transform_1(%arg0: i32, %arg1: memref<1xi32, #tpu.memory_space<smem>>) -> (i32, i32) {
    %c0_i32 = arith.constant 0 : i32
    %c0_i32_0 = arith.constant 0 : i32
    return %arg0, %c0_i32 : i32, i32
  }
}

</mosaic_0001>

<llo_original>
// kernel: tpu_custom_call.1
$region0: #{tpu_custom_call.1}
  #allocation0 [shape = 'u32[]', space=smem, size = 0x4, offset = 0x4, fixed_abs, tag = 'smem constant byte address 0x4 - core index']
  #allocation1 [shape = 'u32[144,128]{1,0:T(1,128)}', space=vmem, size = 0x12000, scoped, tag = 'internal scratch']
  #allocation2 [shape = 's32[1]{0}', space=sflag, size = 0x4, scoped, tag = 'scoped memory for tpu_custom_call.1']
  #allocation3 [shape = 's32[1]{0:T(128)S(6)}', space=smem, size = 0x200, scoped, tag = 'prefetched SMEM operand 0']
  %s0 = inlined_call_operand.<no memory space> [shape: s32[1], index: 0, kind: input, shape index: {}]
  %s1 = inlined_call_operand.hbm [shape: f32[16,128], index: 1, kind: input, shape index: {}]
  %s2 = inlined_call_operand.hbm [shape: f32[16,128], index: 2, kind: output, shape index: {}]
  %s3 = sld [smem:[#allocation0]]
  $region18: #{tpu_custom_call.1} parent=0
    _
  %s5 = ssub.s32 1, %s3
  %s6 = scalar_select 0, %s5, %s3
  %7 = sst [smem:[#allocation3]] %s0
  $region1: #{tpu_custom_call.1} parent=0
    #allocation4 [shape = 'u8[8192]{0}', space=vmem, size = 0x2000, scoped, tag = 'input window, operand 1, single buffered']
    #allocation5 [shape = 's32[1]{0}', space=sflag, size = 0x4, scoped, tag = 'scoped memory for tpu_custom_call.1']
    #allocation6 [shape = 's32[1]{0}', space=sflag, size = 0x4, scoped, tag = 'scoped memory for tpu_custom_call.1']
    #allocation7 [shape = 'u8[8192]{0}', space=vmem, size = 0x2000, scoped, tag = 'output window, operand 0, single buffered']
    %8 = vsyncpa [#allocation5], 0
    %9 = vsyncpa [#allocation6], 0
    // Predicated region
    $region2: #{tpu_custom_call.1} parent=1 // pred_check
      _
    $region3: #{tpu_custom_call.1} parent=1 // pred_check_branch
      %11 = sbr.rel (0) target = $region5
    $region4: #{tpu_custom_call.1} parent=1 // pred_region
      %s13 = ssub.s32 256, 256
      %14 = vsyncadd [#allocation5], %s13
      %s15 = sshll.u32 [#allocation4], 4
      %s16 = int_to_ptr.vmem [resolvable:$true] %s15
      %21 = dma.hbm_to_vmem [thread:$0]  %s1, 256, %s16, [#allocation5], 128, 128, 8
    $region5: #{tpu_custom_call.1} parent=1 // pred_fallthru
      _
    // Predicated region
    $region6: #{tpu_custom_call.1} parent=1 // pred_check
      _
    $region7: #{tpu_custom_call.1} parent=1 // pred_check_branch
      %23 = sbr.rel (0) target = $region9
    $region8: #{tpu_custom_call.1} parent=1 // pred_region
      %24 = dma.done [#allocation5], 256
    $region9: #{tpu_custom_call.1} parent=1 // pred_fallthru
      _
    %v25 = vld [vmem:[#allocation4] sm:$0xff]
    %v26 = vld [vmem:[#allocation4 + $0x8] sm:$0xff]
    %s27 = sld [smem:[#allocation3]]
    %v28 = vlaneseq
    %v29 = vshrl.u32 %v28, 7
    %v30 = vadd.s32 %v29, 8
    %v31 = vlaneseq
    %v32 = vand.u32 %v31, 127
    %s33 = smul.u32 0, 16
    %v34 = vstv %s33
    %v35 = vadd.s32 %v34, %v29
    %v36 = vadd.s32 %v34, %v30
    %v37 = vmul.u32 %v35, 128
    %v38 = vmul.u32 %v36, 128
    %v39 = vadd.s32 %v37, %v32
    %v40 = vadd.s32 %v38, %v32
    %s41 = smul.u32 %s27, 2654435769
    %v42 = vstv %s41
    %v43 = vxor.u32 %v39, %v42
    %v44 = vxor.u32 %v40, %v42
    %v45 = vshrl.u32 %v43, 16
    %v46 = vshrl.u32 %v44, 16
    %v47 = vxor.u32 %v43, %v45
    %v48 = vxor.u32 %v44, %v46
    %v49 = vmul.u32 %v47, 2146121005
    %v50 = vmul.u32 %v48, 2146121005
    %v51 = vshrl.u32 %v49, 15
    %v52 = vshrl.u32 %v50, 15
    %v53 = vxor.u32 %v49, %v51
    %v54 = vxor.u32 %v50, %v52
    %v55 = vmul.u32 %v53, 2221713035
    %v56 = vmul.u32 %v54, 2221713035
    %v57 = vshrl.u32 %v55, 16
    %v58 = vshrl.u32 %v56, 16
    %v59 = vxor.u32 %v55, %v57
    %v60 = vxor.u32 %v56, %v58
    %v61 = vadd.s32 %v59, 2246822507
    %v62 = vadd.s32 %v60, 2246822507
    %v63 = vshrl.u32 %v61, 16
    %v64 = vshrl.u32 %v62, 16
    %v65 = vxor.u32 %v61, %v63
    %v66 = vxor.u32 %v62, %v64
    %v67 = vmul.u32 %v65, 2146121005
    %v68 = vmul.u32 %v66, 2146121005
    %v69 = vshrl.u32 %v67, 15
    %v70 = vshrl.u32 %v68, 15
    %v71 = vxor.u32 %v67, %v69
    %v72 = vxor.u32 %v68, %v70
    %v73 = vmul.u32 %v71, 2221713035
    %v74 = vmul.u32 %v72, 2221713035
    %v75 = vshrl.u32 %v73, 16
    %v76 = vshrl.u32 %v74, 16
    %v77 = vxor.u32 %v73, %v75
    %v78 = vxor.u32 %v74, %v76
    %v79 = vshrl.u32 %v77, 8
    %v80 = vshrl.u32 %v78, 8
    %v81 = vcvt.s32.f32 %v79
    %v82 = vcvt.s32.f32 %v80
    %v83 = vadd.f32 %v81, 0.5
    %v84 = vadd.f32 %v82, 0.5
    %v85 = vmul.f32 %v83, 5.9604645e-08
    %v86 = vmul.f32 %v84, 5.9604645e-08
    %v87 = vlog2.pop %v85
    %v88 = vmul.f32 %v87, 0.6931472
    %v89 = vlog2.pop %v86
    %v90 = vmul.f32 %v89, 0.6931472
    %v91 = vsub.f32 0.0, %v88
    %v92 = vsub.f32 0.0, %v90
    %v93 = vlog2.pop %v91
    %v94 = vmul.f32 %v93, 0.6931472
    %v95 = vlog2.pop %v92
    %v96 = vmul.f32 %v95, 0.6931472
    %v97 = vsub.f32 0.0, %v94
    %v98 = vsub.f32 0.0, %v96
    %v99 = vadd.f32 %v25, %v97
    %v100 = vadd.f32 %v26, %v98
    %v101 = vadd.f32 %v99, 0.0
    %v102 = vadd.f32 %v100, 0.0
    %vm103 = vcmp.gt.f32.partialorder %v101, 0.0
    %vm104 = vcmp.gt.f32.partialorder %v102, 0.0
    %v105 = vsel %vm103, 1, 0
    %v106 = vsel %vm104, 1, 0
    %v107 = vcvt.s32.f32 %v105
    %v108 = vcvt.s32.f32 %v106
    %109 = vst [vmem:[#allocation7] sm:$0xff] %v107
    %110 = vst [vmem:[#allocation7 + $0x8] sm:$0xff] %v108
    // Predicated region
    $region10: #{tpu_custom_call.1} parent=1 // pred_check
      _
    $region11: #{tpu_custom_call.1} parent=1 // pred_check_branch
      %112 = sbr.rel (0) target = $region13
    $region12: #{tpu_custom_call.1} parent=1 // pred_region
      %s114 = ssub.s32 256, 256
      %115 = vsyncadd [#allocation6], %s114
      %s116 = sshll.u32 [#allocation7], 4
      %s117 = int_to_ptr.vmem [resolvable:$true] %s116
      %122 = dma.vmem_to_hbm [thread:$0]  %s117, 256, %s2, [#allocation6], 128, 128, 8
    $region13: #{tpu_custom_call.1} parent=1 // pred_fallthru
      _
    // Predicated region
    $region14: #{tpu_custom_call.1} parent=1 // pred_check
      _
    $region15: #{tpu_custom_call.1} parent=1 // pred_check_branch
      %124 = sbr.rel (0) target = $region17
    $region16: #{tpu_custom_call.1} parent=1 // pred_region
      %125 = dma.done [#allocation6], 256
    $region17: #{tpu_custom_call.1} parent=1 // pred_fallthru
      _
    %126 = vsyncpa [#allocation5], 1
    %127 = vsyncpa [#allocation6], 1

</llo_original>
